<compile_context>
chip_gen: v6e
topology: v6e:2x2x1
jax: 0.10.0
libtpu: 0.0.40
codegen_flags: <defaults>
</compile_context>

<pallas_src>
import jax
import jax.numpy as jnp
from jax.experimental import pallas as pl
from jax.experimental.pallas import tpu as pltpu


def dqn_kernel(x_ref, w1_ref, b1_ref, w2_ref, b2_ref, w3t_ref, b3_ref, o_ref):
    x = x_ref[...]                                    # (T, 5)   f32
    w1 = w1_ref[...]                                  # (5, 128) f32

    # --- fc1 + ReLU: K=5 -> 5 broadcast FMAs on the VPU (MXU would be mostly padding)
    h1 = x[:, 0:1] * w1[0:1, :]                       # (T,1)*(1,128) -> (T,128)
    for k in range(1, 5):                             # static unroll
        h1 = h1 + x[:, k:k + 1] * w1[k:k + 1, :]
    h1 = jnp.maximum(h1 + b1_ref[...], 0.0)           # (T, 128) f32

    # --- fc2 + ReLU: the only MXU matmul; bf16 operands, f32 accumulation
    h2 = jnp.dot(h1.astype(jnp.bfloat16), w2_ref[...],
                 preferred_element_type=jnp.float32)
    h2 = jnp.maximum(h2 + b2_ref[...], 0.0)           # (T, 128) f32

    # --- fc3: N=3 -> 3 multiply + cross-lane reductions (VPU + XLU), no MXU pass
    b3 = b3_ref[...]                                  # (1, 3)
    for j in range(3):                                # static unroll
        col = jnp.sum(h2 * w3t_ref[j:j + 1, :], axis=-1, keepdims=True)  # (T, 1)
        o_ref[:, j:j + 1] = (col + b3[:, j:j + 1]).astype(o_ref.dtype)


def _round_up(n, m):
    return ((n + m - 1) // m) * m


def dqn_forward(x, params, *, tile_b=512):
    """x: (B, 5) float32. params: dict of w1,b1,w2,b2,w3,b3 (weights in (in,out) layout)."""
    w1, b1 = params["w1"], params["b1"]
    w2, b2 = params["w2"], params["b2"]
    w3, b3 = params["w3"], params["b3"]

    B = x.shape[0]
    # Batch tile: multiple of 8 sublanes; clamp to (padded) batch so small
    # batches still form a single legal block.
    tile_b = min(tile_b, _round_up(B, 8))
    Bp = _round_up(B, tile_b)
    if Bp != B:
        x = jnp.pad(x, ((0, Bp - B), (0, 0)))         # zero rows, sliced off below

    w2_bf16 = w2.astype(jnp.bfloat16)                 # MXU operand; resident in VMEM
    w3t = w3.T                                        # (3, 128): lane-aligned rows for VPU fc3

    grid = (Bp // tile_b,)
    const = lambda shape: pl.BlockSpec(shape, lambda i: (0,) * len(shape))

    out = pl.pallas_call(
        dqn_kernel,
        out_shape=jax.ShapeDtypeStruct((Bp, 3), jnp.float32),
        grid=grid,
        in_specs=[
            pl.BlockSpec((tile_b, 5), lambda i: (i, 0)),    # x: batch-tiled
            const(w1.shape), const(b1.shape),               # weights/biases: resident
            const(w2_bf16.shape), const(b2.shape),
            const(w3t.shape), const(b3.shape),
        ],
        out_specs=pl.BlockSpec((tile_b, 3), lambda i: (i, 0)),
        compiler_params=pltpu.CompilerParams(
            dimension_semantics=("parallel",)),             # megacore on v7x
    )(x, w1, b1, w2_bf16, b2, w3t, b3)
    return out[:B]


def init_params(key):
    """Deterministic init mimicking PyTorch nn.Linear default:
    U(-1/sqrt(fan_in), 1/sqrt(fan_in)) for both weights and biases."""
    dims = [(5, 128), (128, 128), (128, 3)]
    params = {}
    for i, (fan_in, fan_out) in enumerate(dims, start=1):
        key, kw, kb = jax.random.split(key, 3)
        bound = 1.0 / jnp.sqrt(jnp.float32(fan_in))
        params[f"w{i}"] = jax.random.uniform(
            kw, (fan_in, fan_out), jnp.float32, -bound, bound)   # (in, out) layout
        params[f"b{i}"] = jax.random.uniform(
            kb, (1, fan_out), jnp.float32, -bound, bound)        # 2D for TPU layout
    return params


def reference_forward(x, params):
    # Pure-f32 reference matching the PyTorch forward exactly.
    h1 = jnp.maximum(x @ params["w1"] + params["b1"], 0.0)
    h2 = jnp.maximum(h1 @ params["w2"] + params["b2"], 0.0)
    return h2 @ params["w3"] + params["b3"]


if __name__ == "__main__":
    key = jax.random.PRNGKey(0)
    key, kx = jax.random.split(key)
    params = init_params(key)

    # small batch of states: (ball_x, ball_y, vel_x, vel_y, paddle_y)
    batch = 64
    x = jax.random.normal(kx, (batch, 5), jnp.float32)

    ref = reference_forward(x, params)

    # Single-tile path.
    out = jax.block_until_ready(dqn_forward(x, params))
    assert out.shape == (batch, 3), out.shape
    # bf16 MXU operands (f32 accumulation) -> tolerance loosened vs pure-f32 reference.
    assert jnp.allclose(out, ref, atol=2e-2, rtol=2e-2), \
        float(jnp.max(jnp.abs(out - ref)))

    # Multi-step grid path (4 batch tiles, resident weights) + padding path.
    out_tiled = jax.block_until_ready(dqn_forward(x, params, tile_b=16))
    assert jnp.allclose(out_tiled, ref, atol=2e-2, rtol=2e-2)

    x_odd = x[:13]
    out_odd = jax.block_until_ready(dqn_forward(x_odd, params))
    assert out_odd.shape == (13, 3)
    assert jnp.allclose(out_odd, ref[:13], atol=2e-2, rtol=2e-2)

    print("KERNEL_OK")
</pallas_src>

<mosaic_0001>
module attributes {stable_mosaic.version = 11 : i64} {
  func.func @dqn_kernel(%arg0: i32, %arg1: memref<64x5xf32, #tpu.memory_space<vmem>>, %arg2: memref<5x128xf32, #tpu.memory_space<vmem>>, %arg3: memref<1x128xf32, #tpu.memory_space<vmem>>, %arg4: memref<128x128xbf16, #tpu.memory_space<vmem>>, %arg5: memref<1x128xf32, #tpu.memory_space<vmem>>, %arg6: memref<3x128xf32, #tpu.memory_space<vmem>>, %arg7: memref<1x3xf32, #tpu.memory_space<vmem>>, %arg8: memref<64x3xf32, #tpu.memory_space<vmem>>) attributes {dimension_semantics = [#tpu.dimension_semantics<parallel>], iteration_bounds = array<i64: 1>, scalar_prefetch = 0 : i64, scratch_operands = 0 : i64, tpu.core_type = #tpu.core_type<tc>, window_params = [{transform_indices = @transform_0, window_bounds = array<i64: 64, 5>}, {pipeline_mode = #tpu.pipeline_mode<synchronous>, transform_indices = @transform_1, window_bounds = array<i64: 5, 128>}, {pipeline_mode = #tpu.pipeline_mode<synchronous>, transform_indices = @transform_2, window_bounds = array<i64: 1, 128>}, {pipeline_mode = #tpu.pipeline_mode<synchronous>, transform_indices = @transform_3, window_bounds = array<i64: 128, 128>}, {pipeline_mode = #tpu.pipeline_mode<synchronous>, transform_indices = @transform_4, window_bounds = array<i64: 1, 128>}, {pipeline_mode = #tpu.pipeline_mode<synchronous>, transform_indices = @transform_5, window_bounds = array<i64: 3, 128>}, {pipeline_mode = #tpu.pipeline_mode<synchronous>, transform_indices = @transform_6, window_bounds = array<i64: 1, 3>}, {transform_indices = @transform_7, window_bounds = array<i64: 64, 3>}]} {
    %c0 = arith.constant 0 : index
    %c0_0 = arith.constant 0 : index
    %0 = vector.load %arg1[%c0, %c0_0] : memref<64x5xf32, #tpu.memory_space<vmem>>, vector<64x5xf32>
    %c0_1 = arith.constant 0 : index
    %c0_2 = arith.constant 0 : index
    %1 = vector.load %arg2[%c0_1, %c0_2] : memref<5x128xf32, #tpu.memory_space<vmem>>, vector<5x128xf32>
    %2 = vector.extract_strided_slice %0 {offsets = [0, 0], sizes = [64, 1], strides = [1, 1]} : vector<64x5xf32> to vector<64x1xf32>
    %3 = vector.extract_strided_slice %1 {offsets = [0, 0], sizes = [1, 128], strides = [1, 1]} : vector<5x128xf32> to vector<1x128xf32>
    %4 = vector.broadcast %2 : vector<64x1xf32> to vector<64x128xf32>
    %5 = vector.broadcast %3 : vector<1x128xf32> to vector<64x128xf32>
    %6 = arith.mulf %4, %5 : vector<64x128xf32>
    %7 = vector.extract_strided_slice %0 {offsets = [0, 1], sizes = [64, 1], strides = [1, 1]} : vector<64x5xf32> to vector<64x1xf32>
    %8 = vector.extract_strided_slice %1 {offsets = [1, 0], sizes = [1, 128], strides = [1, 1]} : vector<5x128xf32> to vector<1x128xf32>
    %9 = vector.broadcast %7 : vector<64x1xf32> to vector<64x128xf32>
    %10 = vector.broadcast %8 : vector<1x128xf32> to vector<64x128xf32>
    %11 = arith.mulf %9, %10 : vector<64x128xf32>
    %12 = arith.addf %6, %11 : vector<64x128xf32>
    %13 = vector.extract_strided_slice %0 {offsets = [0, 2], sizes = [64, 1], strides = [1, 1]} : vector<64x5xf32> to vector<64x1xf32>
    %14 = vector.extract_strided_slice %1 {offsets = [2, 0], sizes = [1, 128], strides = [1, 1]} : vector<5x128xf32> to vector<1x128xf32>
    %15 = vector.broadcast %13 : vector<64x1xf32> to vector<64x128xf32>
    %16 = vector.broadcast %14 : vector<1x128xf32> to vector<64x128xf32>
    %17 = arith.mulf %15, %16 : vector<64x128xf32>
    %18 = arith.addf %12, %17 : vector<64x128xf32>
    %19 = vector.extract_strided_slice %0 {offsets = [0, 3], sizes = [64, 1], strides = [1, 1]} : vector<64x5xf32> to vector<64x1xf32>
    %20 = vector.extract_strided_slice %1 {offsets = [3, 0], sizes = [1, 128], strides = [1, 1]} : vector<5x128xf32> to vector<1x128xf32>
    %21 = vector.broadcast %19 : vector<64x1xf32> to vector<64x128xf32>
    %22 = vector.broadcast %20 : vector<1x128xf32> to vector<64x128xf32>
    %23 = arith.mulf %21, %22 : vector<64x128xf32>
    %24 = arith.addf %18, %23 : vector<64x128xf32>
    %25 = vector.extract_strided_slice %0 {offsets = [0, 4], sizes = [64, 1], strides = [1, 1]} : vector<64x5xf32> to vector<64x1xf32>
    %26 = vector.extract_strided_slice %1 {offsets = [4, 0], sizes = [1, 128], strides = [1, 1]} : vector<5x128xf32> to vector<1x128xf32>
    %27 = vector.broadcast %25 : vector<64x1xf32> to vector<64x128xf32>
    %28 = vector.broadcast %26 : vector<1x128xf32> to vector<64x128xf32>
    %29 = arith.mulf %27, %28 : vector<64x128xf32>
    %30 = arith.addf %24, %29 : vector<64x128xf32>
    %c0_3 = arith.constant 0 : index
    %c0_4 = arith.constant 0 : index
    %31 = vector.load %arg3[%c0_3, %c0_4] : memref<1x128xf32, #tpu.memory_space<vmem>>, vector<1x128xf32>
    %32 = vector.broadcast %31 : vector<1x128xf32> to vector<64x128xf32>
    %33 = arith.addf %30, %32 : vector<64x128xf32>
    %cst = arith.constant 0.000000e+00 : f32
    %34 = vector.broadcast %cst : f32 to vector<64x128xf32>
    %35 = arith.maximumf %33, %34 : vector<64x128xf32>
    %36 = arith.truncf %35 : vector<64x128xf32> to vector<64x128xbf16>
    %c0_5 = arith.constant 0 : index
    %c0_6 = arith.constant 0 : index
    %37 = vector.load %arg4[%c0_5, %c0_6] : memref<128x128xbf16, #tpu.memory_space<vmem>>, vector<128x128xbf16>
    %cst_7 = arith.constant dense<0.000000e+00> : vector<64x128xf32>
    %38 = tpu.matmul %36, %37, %cst_7 {dimension_numbers = #tpu.dot_dimension_numbers<[1], [0], [0], [1], [0, 0, 1, 1], [], []>} : vector<64x128xbf16>, vector<128x128xbf16>, vector<64x128xf32> -> vector<64x128xf32>
    %c0_8 = arith.constant 0 : index
    %c0_9 = arith.constant 0 : index
    %39 = vector.load %arg5[%c0_8, %c0_9] : memref<1x128xf32, #tpu.memory_space<vmem>>, vector<1x128xf32>
    %40 = vector.broadcast %39 : vector<1x128xf32> to vector<64x128xf32>
    %41 = arith.addf %38, %40 : vector<64x128xf32>
    %cst_10 = arith.constant 0.000000e+00 : f32
    %42 = vector.broadcast %cst_10 : f32 to vector<64x128xf32>
    %43 = arith.maximumf %41, %42 : vector<64x128xf32>
    %c0_11 = arith.constant 0 : index
    %c0_12 = arith.constant 0 : index
    %44 = vector.load %arg7[%c0_11, %c0_12] : memref<1x3xf32, #tpu.memory_space<vmem>>, vector<1x3xf32>
    %c0_13 = arith.constant 0 : index
    %c0_14 = arith.constant 0 : index
    %45 = vector.load %arg6[%c0_13, %c0_14] : memref<3x128xf32, #tpu.memory_space<vmem>>, vector<1x128xf32>
    %46 = vector.broadcast %45 : vector<1x128xf32> to vector<64x128xf32>
    %47 = arith.mulf %43, %46 : vector<64x128xf32>
    %cst_15 = arith.constant dense<0.000000e+00> : vector<64xf32>
    %48 = vector.multi_reduction <add>, %47, %cst_15 [1] : vector<64x128xf32> to vector<64xf32>
    %49 = vector.shape_cast %48 : vector<64xf32> to vector<64x1xf32>
    %50 = vector.extract_strided_slice %44 {offsets = [0, 0], sizes = [1, 1], strides = [1, 1]} : vector<1x3xf32> to vector<1x1xf32>
    %51 = vector.broadcast %50 : vector<1x1xf32> to vector<64x1xf32>
    %52 = arith.addf %49, %51 : vector<64x1xf32>
    %c0_16 = arith.constant 0 : index
    %c0_17 = arith.constant 0 : index
    %53 = vector.load %arg8[%c0_16, %c0_17] : memref<64x3xf32, #tpu.memory_space<vmem>>, vector<64x1xf32>
    tpu.vector_store %arg8[%c0_16, %c0_17], %52 {strides = array<i32>} : memref<64x3xf32, #tpu.memory_space<vmem>>, vector<64x1xf32>,
    %c1 = arith.constant 1 : index
    %c0_18 = arith.constant 0 : index
    %54 = vector.load %arg6[%c1, %c0_18] : memref<3x128xf32, #tpu.memory_space<vmem>>, vector<1x128xf32>
    %55 = vector.broadcast %54 : vector<1x128xf32> to vector<64x128xf32>
    %56 = arith.mulf %43, %55 : vector<64x128xf32>
    %cst_19 = arith.constant dense<0.000000e+00> : vector<64xf32>
    %57 = vector.multi_reduction <add>, %56, %cst_19 [1] : vector<64x128xf32> to vector<64xf32>
    %58 = vector.shape_cast %57 : vector<64xf32> to vector<64x1xf32>
    %59 = vector.extract_strided_slice %44 {offsets = [0, 1], sizes = [1, 1], strides = [1, 1]} : vector<1x3xf32> to vector<1x1xf32>
    %60 = vector.broadcast %59 : vector<1x1xf32> to vector<64x1xf32>
    %61 = arith.addf %58, %60 : vector<64x1xf32>
    %c0_20 = arith.constant 0 : index
    %c1_21 = arith.constant 1 : index
    %62 = vector.load %arg8[%c0_20, %c1_21] : memref<64x3xf32, #tpu.memory_space<vmem>>, vector<64x1xf32>
    tpu.vector_store %arg8[%c0_20, %c1_21], %61 {strides = array<i32>} : memref<64x3xf32, #tpu.memory_space<vmem>>, vector<64x1xf32>,
    %c2 = arith.constant 2 : index
    %c0_22 = arith.constant 0 : index
    %63 = vector.load %arg6[%c2, %c0_22] : memref<3x128xf32, #tpu.memory_space<vmem>>, vector<1x128xf32>
    %64 = vector.broadcast %63 : vector<1x128xf32> to vector<64x128xf32>
    %65 = arith.mulf %43, %64 : vector<64x128xf32>
    %cst_23 = arith.constant dense<0.000000e+00> : vector<64xf32>
    %66 = vector.multi_reduction <add>, %65, %cst_23 [1] : vector<64x128xf32> to vector<64xf32>
    %67 = vector.shape_cast %66 : vector<64xf32> to vector<64x1xf32>
    %68 = vector.extract_strided_slice %44 {offsets = [0, 2], sizes = [1, 1], strides = [1, 1]} : vector<1x3xf32> to vector<1x1xf32>
    %69 = vector.broadcast %68 : vector<1x1xf32> to vector<64x1xf32>
    %70 = arith.addf %67, %69 : vector<64x1xf32>
    %c0_24 = arith.constant 0 : index
    %c2_25 = arith.constant 2 : index
    %71 = vector.load %arg8[%c0_24, %c2_25] : memref<64x3xf32, #tpu.memory_space<vmem>>, vector<64x1xf32>
    tpu.vector_store %arg8[%c0_24, %c2_25], %70 {strides = array<i32>} : memref<64x3xf32, #tpu.memory_space<vmem>>, vector<64x1xf32>,
    return
  }
  func.func @transform_0(%arg0: i32) -> (i32, i32) {
    %c0_i32 = arith.constant 0 : i32
    %c0_i32_0 = arith.constant 0 : i32
    return %arg0, %c0_i32 : i32, i32
  }
  func.func @transform_1(%arg0: i32) -> (i32, i32) {
    %c0_i32 = arith.constant 0 : i32
    %c0_i32_0 = arith.constant 0 : i32
    %c0_i32_1 = arith.constant 0 : i32
    return %c0_i32, %c0_i32_0 : i32, i32
  }
  func.func @transform_2(%arg0: i32) -> (i32, i32) {
    %c0_i32 = arith.constant 0 : i32
    %c0_i32_0 = arith.constant 0 : i32
    %c0_i32_1 = arith.constant 0 : i32
    return %c0_i32, %c0_i32_0 : i32, i32
  }
  func.func @transform_3(%arg0: i32) -> (i32, i32) {
    %c0_i32 = arith.constant 0 : i32
    %c0_i32_0 = arith.constant 0 : i32
    %c0_i32_1 = arith.constant 0 : i32
    return %c0_i32, %c0_i32_0 : i32, i32
  }
  func.func @transform_4(%arg0: i32) -> (i32, i32) {
    %c0_i32 = arith.constant 0 : i32
    %c0_i32_0 = arith.constant 0 : i32
    %c0_i32_1 = arith.constant 0 : i32
    return %c0_i32, %c0_i32_0 : i32, i32
  }
  func.func @transform_5(%arg0: i32) -> (i32, i32) {
    %c0_i32 = arith.constant 0 : i32
    %c0_i32_0 = arith.constant 0 : i32
    %c0_i32_1 = arith.constant 0 : i32
    return %c0_i32, %c0_i32_0 : i32, i32
  }
  func.func @transform_6(%arg0: i32) -> (i32, i32) {
    %c0_i32 = arith.constant 0 : i32
    %c0_i32_0 = arith.constant 0 : i32
    %c0_i32_1 = arith.constant 0 : i32
    return %c0_i32, %c0_i32_0 : i32, i32
  }
  func.func @transform_7(%arg0: i32) -> (i32, i32) {
    %c0_i32 = arith.constant 0 : i32
    %c0_i32_0 = arith.constant 0 : i32
    return %arg0, %c0_i32 : i32, i32
  }
}

</mosaic_0001>

<llo_original>
// kernel: tpu_custom_call.1
$region0: #{tpu_custom_call.1}
  #allocation0 [shape = 'u32[]', space=smem, size = 0x4, offset = 0x4, fixed_abs, tag = 'smem constant byte address 0x4 - core index']
  #allocation1 [shape = 'u32[144,128]{1,0:T(1,128)}', space=vmem, size = 0x12000, scoped, tag = 'internal scratch']
  %s0 = inlined_call_operand.vmem [shape: f32[64,5], index: 0, kind: input, shape index: {}]
  %s1 = inlined_call_operand.vmem [shape: f32[5,128], index: 1, kind: input, shape index: {}]
  %s2 = inlined_call_operand.vmem [shape: f32[1,128], index: 2, kind: input, shape index: {}]
  %s3 = inlined_call_operand.vmem [shape: bf16[128,128], index: 3, kind: input, shape index: {}]
  %s4 = inlined_call_operand.vmem [shape: f32[1,128], index: 4, kind: input, shape index: {}]
  %s5 = inlined_call_operand.vmem [shape: f32[3,128], index: 5, kind: input, shape index: {}]
  %s6 = inlined_call_operand.vmem [shape: f32[1,3], index: 6, kind: input, shape index: {}]
  %s7 = inlined_call_operand.vmem [shape: f32[64,3], index: 7, kind: output, shape index: {}]
  %s8 = sld [smem:[#allocation0]]
  $region38: #{tpu_custom_call.1} parent=0
    _
  %s10 = ssub.s32 1, %s8
  %s11 = scalar_select 0, %s10, %s8
  // Predicated region
  $region2: #{tpu_custom_call.1} parent=0 // pred_check
    _
  $region3: #{tpu_custom_call.1} parent=0 // pred_check_branch
    %13 = sbr.rel (0) target = $region5
  $region4: #{tpu_custom_call.1} parent=0 // pred_region
    _
  $region5: #{tpu_custom_call.1} parent=0 // pred_fallthru
    _
  // Predicated region
  $region6: #{tpu_custom_call.1} parent=0 // pred_check
    _
  $region7: #{tpu_custom_call.1} parent=0 // pred_check_branch
    %15 = sbr.rel (0) target = $region9
  $region8: #{tpu_custom_call.1} parent=0 // pred_region
    _
  $region9: #{tpu_custom_call.1} parent=0 // pred_fallthru
    _
  // Predicated region
  $region10: #{tpu_custom_call.1} parent=0 // pred_check
    _
  $region11: #{tpu_custom_call.1} parent=0 // pred_check_branch
    %17 = sbr.rel (0) target = $region13
  $region12: #{tpu_custom_call.1} parent=0 // pred_region
    _
  $region13: #{tpu_custom_call.1} parent=0 // pred_fallthru
    _
  // Predicated region
  $region14: #{tpu_custom_call.1} parent=0 // pred_check
    _
  $region15: #{tpu_custom_call.1} parent=0 // pred_check_branch
    %19 = sbr.rel (0) target = $region17
  $region16: #{tpu_custom_call.1} parent=0 // pred_region
    _
  $region17: #{tpu_custom_call.1} parent=0 // pred_fallthru
    _
  // Predicated region
  $region18: #{tpu_custom_call.1} parent=0 // pred_check
    _
  $region19: #{tpu_custom_call.1} parent=0 // pred_check_branch
    %21 = sbr.rel (0) target = $region21
  $region20: #{tpu_custom_call.1} parent=0 // pred_region
    _
  $region21: #{tpu_custom_call.1} parent=0 // pred_fallthru
    _
  // Predicated region
  $region22: #{tpu_custom_call.1} parent=0 // pred_check
    _
  $region23: #{tpu_custom_call.1} parent=0 // pred_check_branch
    %23 = sbr.rel (0) target = $region25
  $region24: #{tpu_custom_call.1} parent=0 // pred_region
    _
  $region25: #{tpu_custom_call.1} parent=0 // pred_fallthru
    _
  // Predicated region
  $region26: #{tpu_custom_call.1} parent=0 // pred_check
    _
  $region27: #{tpu_custom_call.1} parent=0 // pred_check_branch
    %25 = sbr.rel (0) target = $region29
  $region28: #{tpu_custom_call.1} parent=0 // pred_region
    _
  $region29: #{tpu_custom_call.1} parent=0 // pred_fallthru
    _
  %v27 = vld [vmem:[%s0] sm:$0xff]
  %v28 = vld [vmem:[%s0 + $0x8] sm:$0xff]
  %v29 = vld [vmem:[%s0 + $0x10] sm:$0xff]
  %v30 = vld [vmem:[%s0 + $0x18] sm:$0xff]
  %v31 = vld [vmem:[%s0 + $0x20] sm:$0xff]
  %v32 = vld [vmem:[%s0 + $0x28] sm:$0xff]
  %v33 = vld [vmem:[%s0 + $0x30] sm:$0xff]
  %v34 = vld [vmem:[%s0 + $0x38] sm:$0xff]
  %v35 = vld [vmem:[%s1] sm:$0x1f]
  %37 = vset.pattern.permute.xlu0 0
  %38 = vperm.xlu0 %37, %v27
  %v39 = vpop.permute.xlu0 %38
  %42 = vset.pattern.permute.xlu0 0
  %43 = vperm.xlu0 %42, %v28
  %v44 = vpop.permute.xlu0 %43
  %47 = vset.pattern.permute.xlu0 0
  %48 = vperm.xlu0 %47, %v29
  %v49 = vpop.permute.xlu0 %48
  %52 = vset.pattern.permute.xlu0 0
  %53 = vperm.xlu0 %52, %v30
  %v54 = vpop.permute.xlu0 %53
  %57 = vset.pattern.permute.xlu0 0
  %58 = vperm.xlu0 %57, %v31
  %v59 = vpop.permute.xlu0 %58
  %62 = vset.pattern.permute.xlu0 0
  %63 = vperm.xlu0 %62, %v32
  %v64 = vpop.permute.xlu0 %63
  %67 = vset.pattern.permute.xlu0 0
  %68 = vperm.xlu0 %67, %v33
  %v69 = vpop.permute.xlu0 %68
  %72 = vset.pattern.permute.xlu0 0
  %73 = vperm.xlu0 %72, %v34
  %v74 = vpop.permute.xlu0 %73
  %v76 = vlaneseq
  %v77 = vshrl.u32 %v76, 7
  %v78 = vsub.s32 0, %v77
  %v79 = vrot.slane %v35, %v78
  %v80 = vmul.f32 %v39, %v79
  %v81 = vmul.f32 %v44, %v79
  %v82 = vmul.f32 %v49, %v79
  %v83 = vmul.f32 %v54, %v79
  %v84 = vmul.f32 %v59, %v79
  %v85 = vmul.f32 %v64, %v79
  %v86 = vmul.f32 %v69, %v79
  %v87 = vmul.f32 %v74, %v79
  %88 = vset.pattern.permute.xlu0 1
  %89 = vperm.xlu0 %88, %v27
  %v90 = vpop.permute.xlu0 %89
  %92 = vset.pattern.permute.xlu0 1
  %93 = vperm.xlu0 %92, %v28
  %v94 = vpop.permute.xlu0 %93
  %96 = vset.pattern.permute.xlu0 1
  %97 = vperm.xlu0 %96, %v29
  %v98 = vpop.permute.xlu0 %97
  %100 = vset.pattern.permute.xlu0 1
  %101 = vperm.xlu0 %100, %v30
  %v102 = vpop.permute.xlu0 %101
  %104 = vset.pattern.permute.xlu0 1
  %105 = vperm.xlu0 %104, %v31
  %v106 = vpop.permute.xlu0 %105
  %108 = vset.pattern.permute.xlu0 1
  %109 = vperm.xlu0 %108, %v32
  %v110 = vpop.permute.xlu0 %109
  %112 = vset.pattern.permute.xlu0 1
  %113 = vperm.xlu0 %112, %v33
  %v114 = vpop.permute.xlu0 %113
  %116 = vset.pattern.permute.xlu0 1
  %117 = vperm.xlu0 %116, %v34
  %v118 = vpop.permute.xlu0 %117
  %v120 = vlaneseq
  %v121 = vshrl.u32 %v120, 7
  %v122 = vsub.s32 1, %v121
  %v123 = vrot.slane %v35, %v122
  %v124 = vmul.f32 %v90, %v123
  %v125 = vmul.f32 %v94, %v123
  %v126 = vmul.f32 %v98, %v123
  %v127 = vmul.f32 %v102, %v123
  %v128 = vmul.f32 %v106, %v123
  %v129 = vmul.f32 %v110, %v123
  %v130 = vmul.f32 %v114, %v123
  %v131 = vmul.f32 %v118, %v123
  %v132 = vadd.f32 %v80, %v124
  %v133 = vadd.f32 %v81, %v125
  %v134 = vadd.f32 %v82, %v126
  %v135 = vadd.f32 %v83, %v127
  %v136 = vadd.f32 %v84, %v128
  %v137 = vadd.f32 %v85, %v129
  %v138 = vadd.f32 %v86, %v130
  %v139 = vadd.f32 %v87, %v131
  %140 = vset.pattern.permute.xlu0 2
  %141 = vperm.xlu0 %140, %v27
  %v142 = vpop.permute.xlu0 %141
  %144 = vset.pattern.permute.xlu0 2
  %145 = vperm.xlu0 %144, %v28
  %v146 = vpop.permute.xlu0 %145
  %148 = vset.pattern.permute.xlu0 2
  %149 = vperm.xlu0 %148, %v29
  %v150 = vpop.permute.xlu0 %149
  %152 = vset.pattern.permute.xlu0 2
  %153 = vperm.xlu0 %152, %v30
  %v154 = vpop.permute.xlu0 %153
  %156 = vset.pattern.permute.xlu0 2
  %157 = vperm.xlu0 %156, %v31
  %v158 = vpop.permute.xlu0 %157
  %160 = vset.pattern.permute.xlu0 2
  %161 = vperm.xlu0 %160, %v32
  %v162 = vpop.permute.xlu0 %161
  %164 = vset.pattern.permute.xlu0 2
  %165 = vperm.xlu0 %164, %v33
  %v166 = vpop.permute.xlu0 %165
  %168 = vset.pattern.permute.xlu0 2
  %169 = vperm.xlu0 %168, %v34
  %v170 = vpop.permute.xlu0 %169
  %v172 = vlaneseq
  %v173 = vshrl.u32 %v172, 7
  %v174 = vsub.s32 2, %v173
  %v175 = vrot.slane %v35, %v174
  %v176 = vmul.f32 %v142, %v175
  %v177 = vmul.f32 %v146, %v175
  %v178 = vmul.f32 %v150, %v175
  %v179 = vmul.f32 %v154, %v175
  %v180 = vmul.f32 %v158, %v175
  %v181 = vmul.f32 %v162, %v175
  %v182 = vmul.f32 %v166, %v175
  %v183 = vmul.f32 %v170, %v175
  %v184 = vadd.f32 %v132, %v176
  %v185 = vadd.f32 %v133, %v177
  %v186 = vadd.f32 %v134, %v178
  %v187 = vadd.f32 %v135, %v179
  %v188 = vadd.f32 %v136, %v180
  %v189 = vadd.f32 %v137, %v181
  %v190 = vadd.f32 %v138, %v182
  %v191 = vadd.f32 %v139, %v183
  %192 = vset.pattern.permute.xlu0 3
  %193 = vperm.xlu0 %192, %v27
  %v194 = vpop.permute.xlu0 %193
  %196 = vset.pattern.permute.xlu0 3
  %197 = vperm.xlu0 %196, %v28
  %v198 = vpop.permute.xlu0 %197
  %200 = vset.pattern.permute.xlu0 3
  %201 = vperm.xlu0 %200, %v29
  %v202 = vpop.permute.xlu0 %201
  %204 = vset.pattern.permute.xlu0 3
  %205 = vperm.xlu0 %204, %v30
  %v206 = vpop.permute.xlu0 %205
  %208 = vset.pattern.permute.xlu0 3
  %209 = vperm.xlu0 %208, %v31
  %v210 = vpop.permute.xlu0 %209
  %212 = vset.pattern.permute.xlu0 3
  %213 = vperm.xlu0 %212, %v32
  %v214 = vpop.permute.xlu0 %213
  %216 = vset.pattern.permute.xlu0 3
  %217 = vperm.xlu0 %216, %v33
  %v218 = vpop.permute.xlu0 %217
  %220 = vset.pattern.permute.xlu0 3
  %221 = vperm.xlu0 %220, %v34
  %v222 = vpop.permute.xlu0 %221
  %v224 = vlaneseq
  %v225 = vshrl.u32 %v224, 7
  %v226 = vsub.s32 3, %v225
  %v227 = vrot.slane %v35, %v226
  %v228 = vmul.f32 %v194, %v227
  %v229 = vmul.f32 %v198, %v227
  %v230 = vmul.f32 %v202, %v227
  %v231 = vmul.f32 %v206, %v227
  %v232 = vmul.f32 %v210, %v227
  %v233 = vmul.f32 %v214, %v227
  %v234 = vmul.f32 %v218, %v227
  %v235 = vmul.f32 %v222, %v227
  %v236 = vadd.f32 %v184, %v228
  %v237 = vadd.f32 %v185, %v229
  %v238 = vadd.f32 %v186, %v230
  %v239 = vadd.f32 %v187, %v231
  %v240 = vadd.f32 %v188, %v232
  %v241 = vadd.f32 %v189, %v233
  %v242 = vadd.f32 %v190, %v234
  %v243 = vadd.f32 %v191, %v235
  %244 = vset.pattern.permute.xlu0 4
  %245 = vperm.xlu0 %244, %v27
  %v246 = vpop.permute.xlu0 %245
  %248 = vset.pattern.permute.xlu0 4
  %249 = vperm.xlu0 %248, %v28
  %v250 = vpop.permute.xlu0 %249
  %252 = vset.pattern.permute.xlu0 4
  %253 = vperm.xlu0 %252, %v29
  %v254 = vpop.permute.xlu0 %253
  %256 = vset.pattern.permute.xlu0 4
  %257 = vperm.xlu0 %256, %v30
  %v258 = vpop.permute.xlu0 %257
  %260 = vset.pattern.permute.xlu0 4
  %261 = vperm.xlu0 %260, %v31
  %v262 = vpop.permute.xlu0 %261
  %264 = vset.pattern.permute.xlu0 4
  %265 = vperm.xlu0 %264, %v32
  %v266 = vpop.permute.xlu0 %265
  %268 = vset.pattern.permute.xlu0 4
  %269 = vperm.xlu0 %268, %v33
  %v270 = vpop.permute.xlu0 %269
  %272 = vset.pattern.permute.xlu0 4
  %273 = vperm.xlu0 %272, %v34
  %v274 = vpop.permute.xlu0 %273
  %v276 = vlaneseq
  %v277 = vshrl.u32 %v276, 7
  %v278 = vsub.s32 4, %v277
  %v279 = vrot.slane %v35, %v278
  %v280 = vmul.f32 %v246, %v279
  %v281 = vmul.f32 %v250, %v279
  %v282 = vmul.f32 %v254, %v279
  %v283 = vmul.f32 %v258, %v279
  %v284 = vmul.f32 %v262, %v279
  %v285 = vmul.f32 %v266, %v279
  %v286 = vmul.f32 %v270, %v279
  %v287 = vmul.f32 %v274, %v279
  %v288 = vadd.f32 %v236, %v280
  %v289 = vadd.f32 %v237, %v281
  %v290 = vadd.f32 %v238, %v282
  %v291 = vadd.f32 %v239, %v283
  %v292 = vadd.f32 %v240, %v284
  %v293 = vadd.f32 %v241, %v285
  %v294 = vadd.f32 %v242, %v286
  %v295 = vadd.f32 %v243, %v287
  %v296 = vld [vmem:[%s2] sm:$0x1]
  %v298 = vlaneseq
  %v299 = vshrl.u32 %v298, 7
  %v300 = vsub.s32 0, %v299
  %v301 = vrot.slane %v296, %v300
  %v303 = vadd.f32 %v288, %v301
  %v304 = vadd.f32 %v289, %v301
  %v305 = vadd.f32 %v290, %v301
  %v306 = vadd.f32 %v291, %v301
  %v307 = vadd.f32 %v292, %v301
  %v308 = vadd.f32 %v293, %v301
  %v309 = vadd.f32 %v294, %v301
  %v310 = vadd.f32 %v295, %v301
  %v311 = vmax.f32 %v303, 0.0
  %v312 = vmax.f32 %v304, 0.0
  %v313 = vmax.f32 %v305, 0.0
  %v314 = vmax.f32 %v306, 0.0
  %v315 = vmax.f32 %v307, 0.0
  %v316 = vmax.f32 %v308, 0.0
  %v317 = vmax.f32 %v309, 0.0
  %v318 = vmax.f32 %v310, 0.0
  %v319 = vpack.c.bf16 %v312, %v311
  %v320 = vpack.c.bf16 %v314, %v313
  %v321 = vpack.c.bf16 %v316, %v315
  %v322 = vpack.c.bf16 %v318, %v317
  %v323 = vld [vmem:[%s3] sm:$0xf]
  %v324 = vld [vmem:[%s3 + $0x4] sm:$0xf]
  %v325 = vld [vmem:[%s3 + $0x8] sm:$0xf]
  %v326 = vld [vmem:[%s3 + $0xc] sm:$0xf]
  %v327 = vld [vmem:[%s3 + $0x10] sm:$0xf]
  %v328 = vld [vmem:[%s3 + $0x14] sm:$0xf]
  %v329 = vld [vmem:[%s3 + $0x18] sm:$0xf]
  %v330 = vld [vmem:[%s3 + $0x1c] sm:$0xf]
  %v331 = vld [vmem:[%s3 + $0x20] sm:$0xf]
  %v332 = vld [vmem:[%s3 + $0x24] sm:$0xf]
  %v333 = vld [vmem:[%s3 + $0x28] sm:$0xf]
  %v334 = vld [vmem:[%s3 + $0x2c] sm:$0xf]
  %v335 = vld [vmem:[%s3 + $0x30] sm:$0xf]
  %v336 = vld [vmem:[%s3 + $0x34] sm:$0xf]
  %v337 = vld [vmem:[%s3 + $0x38] sm:$0xf]
  %v338 = vld [vmem:[%s3 + $0x3c] sm:$0xf]
  %v339 = vld [vmem:[%s4] sm:$0x1]
  %v341 = vlaneseq
  %v342 = vshrl.u32 %v341, 7
  %v343 = vsub.s32 0, %v342
  %v344 = vrot.slane %v339, %v343
  %v362 = vunpack.c.l.b16 %v323
  %v363 = vunpack.c.l.b16 %v324
  %v364 = vunpack.c.l.b16 %v325
  %v365 = vunpack.c.l.b16 %v326
  %v366 = vunpack.c.l.b16 %v327
  %v367 = vunpack.c.l.b16 %v328
  %v368 = vunpack.c.l.b16 %v329
  %v369 = vunpack.c.l.b16 %v330
  %v370 = vunpack.c.l.b16 %v331
  %v371 = vunpack.c.l.b16 %v332
  %v372 = vunpack.c.l.b16 %v333
  %v373 = vunpack.c.l.b16 %v334
  %v374 = vunpack.c.l.b16 %v335
  %v375 = vunpack.c.l.b16 %v336
  %v376 = vunpack.c.l.b16 %v337
  %v377 = vunpack.c.l.b16 %v338
  %v378 = vpack.c.b16 %v363, %v362
  %v379 = vpack.c.b16 %v365, %v364
  %v380 = vpack.c.b16 %v367, %v366
  %v381 = vpack.c.b16 %v369, %v368
  %v382 = vpack.c.b16 %v371, %v370
  %v383 = vpack.c.b16 %v373, %v372
  %v384 = vpack.c.b16 %v375, %v374
  %v385 = vpack.c.b16 %v377, %v376
  %394 = vmatprep.subr.bf16.mxu0 0
  %395 = vmatpush1.bf16.msra.mxu0 %v385
  %396 = vmatprep.subr.bf16.mxu0 0
  %397 = vmatpush1.bf16.msra.mxu0 %v384
  %398 = vmatprep.subr.bf16.mxu0 0
  %399 = vmatpush1.bf16.msra.mxu0 %v383
  %400 = vmatprep.subr.bf16.mxu0 0
  %401 = vmatpush1.bf16.msra.mxu0 %v382
  %402 = vmatprep.subr.bf16.mxu0 0
  %403 = vmatpush1.bf16.msra.mxu0 %v381
  %404 = vmatprep.subr.bf16.mxu0 0
  %405 = vmatpush1.bf16.msra.mxu0 %v380
  %406 = vmatprep.subr.bf16.mxu0 0
  %407 = vmatpush1.bf16.msra.mxu0 %v379
  %408 = vmatprep.subr.bf16.mxu0 0
  %409 = vmatpush1.bf16.msra.mxu0 %v378
  %410 = vmatprep.subr.bf16.mxu0 0
  %411 = vmatpush2.bf16.msra.mxu0 0
  %412 = vmatprep.subr.bf16.mxu0 0
  %413 = vmatpush2.bf16.msra.mxu0 0
  %414 = vmatprep.subr.bf16.mxu0 0
  %415 = vmatpush2.bf16.msra.mxu0 0
  %416 = vmatprep.subr.bf16.mxu0 0
  %417 = vmatpush2.bf16.msra.mxu0 0
  %418 = vmatprep.subr.bf16.mxu0 0
  %419 = vmatpush2.bf16.msra.mxu0 0
  %420 = vmatprep.subr.bf16.mxu0 0
  %421 = vmatpush2.bf16.msra.mxu0 0
  %422 = vmatprep.subr.bf16.mxu0 0
  %423 = vmatpush2.bf16.msra.mxu0 0
  %424 = vmatprep.subr.bf16.mxu0 0
  %425 = vmatpush2.bf16.msra.mxu0 0
  %426 = vmatprep.mubr.bf16.mxu0 0
  %427 = vmatmul.mubr.bf16.gmra.mxu0 %v319
  %v428 = vpop.f32.mrf.mxu0
  %v429 = vadd.f32 %v344, %v428
  %v430 = vpop.f32.mrf.mxu0
  %v431 = vpop.f32.mrf.mxu0
  %v432 = vadd.f32 %v344, %v431
  %v433 = vpop.f32.mrf.mxu0
  %434 = vmatprep.mubr.bf16.mxu0 0
  %435 = vmatmul.mubr.bf16.gmra.mxu0 %v320
  %v436 = vpop.f32.mrf.mxu0
  %v437 = vadd.f32 %v344, %v436
  %v438 = vpop.f32.mrf.mxu0
  %v439 = vpop.f32.mrf.mxu0
  %v440 = vadd.f32 %v344, %v439
  %v441 = vpop.f32.mrf.mxu0
  %442 = vmatprep.mubr.bf16.mxu0 0
  %443 = vmatmul.mubr.bf16.gmra.mxu0 %v321
  %v444 = vpop.f32.mrf.mxu0
  %v445 = vadd.f32 %v344, %v444
  %v446 = vpop.f32.mrf.mxu0
  %v447 = vpop.f32.mrf.mxu0
  %v448 = vadd.f32 %v344, %v447
  %v449 = vpop.f32.mrf.mxu0
  %450 = vmatprep.mubr.bf16.mxu0 0
  %451 = vmatmul.mubr.bf16.gmra.mxu0 %v322
  %v452 = vpop.f32.mrf.mxu0
  %v453 = vadd.f32 %v344, %v452
  %v454 = vpop.f32.mrf.mxu0
  %v455 = vpop.f32.mrf.mxu0
  %v456 = vadd.f32 %v344, %v455
  %v457 = vpop.f32.mrf.mxu0
  %458 = vdwg.mxu0
  %v459 = vmax.f32 %v429, 0.0
  %v460 = vmax.f32 %v432, 0.0
  %v461 = vmax.f32 %v437, 0.0
  %v462 = vmax.f32 %v440, 0.0
  %v463 = vmax.f32 %v445, 0.0
  %v464 = vmax.f32 %v448, 0.0
  %v465 = vmax.f32 %v453, 0.0
  %v466 = vmax.f32 %v456, 0.0
  %v467 = vld [vmem:[%s6] sm:$0x1]
  %v468 = vld [vmem:[%s5] sm:$0x1]
  %v469 = vlaneseq
  %v470 = vshrl.u32 %v469, 7
  %v471 = vsub.s32 0, %v470
  %v472 = vrot.slane %v468, %v471
  %v473 = vmul.f32 %v459, %v472
  %v474 = vmul.f32 %v460, %v472
  %v475 = vmul.f32 %v461, %v472
  %v476 = vmul.f32 %v462, %v472
  %v477 = vmul.f32 %v463, %v472
  %v478 = vmul.f32 %v464, %v472
  %v479 = vmul.f32 %v465, %v472
  %v480 = vmul.f32 %v466, %v472
  %481 = vadd.xlane.f32.xlu0 %v473
  %v482 = vpop.xlane.xlu0 %481
  %483 = vadd.xlane.f32.xlu0 %v474
  %v484 = vpop.xlane.xlu0 %483
  %485 = vadd.xlane.f32.xlu0 %v475
  %v486 = vpop.xlane.xlu0 %485
  %487 = vadd.xlane.f32.xlu0 %v476
  %v488 = vpop.xlane.xlu0 %487
  %489 = vadd.xlane.f32.xlu0 %v477
  %v490 = vpop.xlane.xlu0 %489
  %491 = vadd.xlane.f32.xlu0 %v478
  %v492 = vpop.xlane.xlu0 %491
  %493 = vadd.xlane.f32.xlu0 %v479
  %v494 = vpop.xlane.xlu0 %493
  %495 = vadd.xlane.f32.xlu0 %v480
  %v496 = vpop.xlane.xlu0 %495
  %v498 = vlaneseq
  %v499 = vshrl.u32 %v498, 7
  %v500 = vsub.s32 0, %v499
  %v501 = vrot.slane %v467, %v500
  %v503 = vadd.f32 %v482, %v501
  %v504 = vadd.f32 %v484, %v501
  %v505 = vadd.f32 %v486, %v501
  %v506 = vadd.f32 %v488, %v501
  %v507 = vadd.f32 %v490, %v501
  %v508 = vadd.f32 %v492, %v501
  %v509 = vadd.f32 %v494, %v501
  %v510 = vadd.f32 %v496, %v501
  %vm511 = vcmask 7168
  %512 = vst.msk [vmem:[%s7] sm:$0xff] %vm511, %v503
  %513 = vst.msk [vmem:[%s7 + $0x8] sm:$0xff] %vm511, %v504
  %514 = vst.msk [vmem:[%s7 + $0x10] sm:$0xff] %vm511, %v505
  %515 = vst.msk [vmem:[%s7 + $0x18] sm:$0xff] %vm511, %v506
  %516 = vst.msk [vmem:[%s7 + $0x20] sm:$0xff] %vm511, %v507
  %517 = vst.msk [vmem:[%s7 + $0x28] sm:$0xff] %vm511, %v508
  %518 = vst.msk [vmem:[%s7 + $0x30] sm:$0xff] %vm511, %v509
  %519 = vst.msk [vmem:[%s7 + $0x38] sm:$0xff] %vm511, %v510
  %v520 = vld [vmem:[%s5 + $0x1] sm:$0x1]
  %v521 = vlaneseq
  %v522 = vshrl.u32 %v521, 7
  %v523 = vsub.s32 0, %v522
  %v524 = vrot.slane %v520, %v523
  %v525 = vmul.f32 %v459, %v524
  %v526 = vmul.f32 %v460, %v524
  %v527 = vmul.f32 %v461, %v524
  %v528 = vmul.f32 %v462, %v524
  %v529 = vmul.f32 %v463, %v524
  %v530 = vmul.f32 %v464, %v524
  %v531 = vmul.f32 %v465, %v524
  %v532 = vmul.f32 %v466, %v524
  %533 = vadd.xlane.f32.xlu0 %v525
  %v534 = vpop.xlane.xlu0 %533
  %535 = vadd.xlane.f32.xlu0 %v526
  %v536 = vpop.xlane.xlu0 %535
  %537 = vadd.xlane.f32.xlu0 %v527
  %v538 = vpop.xlane.xlu0 %537
  %539 = vadd.xlane.f32.xlu0 %v528
  %v540 = vpop.xlane.xlu0 %539
  %541 = vadd.xlane.f32.xlu0 %v529
  %v542 = vpop.xlane.xlu0 %541
  %543 = vadd.xlane.f32.xlu0 %v530
  %v544 = vpop.xlane.xlu0 %543
  %545 = vadd.xlane.f32.xlu0 %v531
  %v546 = vpop.xlane.xlu0 %545
  %547 = vadd.xlane.f32.xlu0 %v532
  %v548 = vpop.xlane.xlu0 %547
  %v549 = vadd.f32 %v534, %v501
  %v550 = vadd.f32 %v536, %v501
  %v551 = vadd.f32 %v538, %v501
  %v552 = vadd.f32 %v540, %v501
  %v553 = vadd.f32 %v542, %v501
  %v554 = vadd.f32 %v544, %v501
  %v555 = vadd.f32 %v546, %v501
  %v556 = vadd.f32 %v548, %v501
  %vm557 = vcmask 15368
  %558 = vst.msk [vmem:[%s7] sm:$0xff] %vm557, %v549
  %559 = vst.msk [vmem:[%s7 + $0x8] sm:$0xff] %vm557, %v550
  %560 = vst.msk [vmem:[%s7 + $0x10] sm:$0xff] %vm557, %v551
  %561 = vst.msk [vmem:[%s7 + $0x18] sm:$0xff] %vm557, %v552
  %562 = vst.msk [vmem:[%s7 + $0x20] sm:$0xff] %vm557, %v553
  %563 = vst.msk [vmem:[%s7 + $0x28] sm:$0xff] %vm557, %v554
  %564 = vst.msk [vmem:[%s7 + $0x30] sm:$0xff] %vm557, %v555
  %565 = vst.msk [vmem:[%s7 + $0x38] sm:$0xff] %vm557, %v556
  %v566 = vld [vmem:[%s5 + $0x2] sm:$0x1]
  %v567 = vlaneseq
  %v568 = vshrl.u32 %v567, 7
  %v569 = vsub.s32 0, %v568
  %v570 = vrot.slane %v566, %v569
  %v571 = vmul.f32 %v459, %v570
  %v572 = vmul.f32 %v460, %v570
  %v573 = vmul.f32 %v461, %v570
  %v574 = vmul.f32 %v462, %v570
  %v575 = vmul.f32 %v463, %v570
  %v576 = vmul.f32 %v464, %v570
  %v577 = vmul.f32 %v465, %v570
  %v578 = vmul.f32 %v466, %v570
  %579 = vadd.xlane.f32.xlu0 %v571
  %v580 = vpop.xlane.xlu0 %579
  %581 = vadd.xlane.f32.xlu0 %v572
  %v582 = vpop.xlane.xlu0 %581
  %583 = vadd.xlane.f32.xlu0 %v573
  %v584 = vpop.xlane.xlu0 %583
  %585 = vadd.xlane.f32.xlu0 %v574
  %v586 = vpop.xlane.xlu0 %585
  %587 = vadd.xlane.f32.xlu0 %v575
  %v588 = vpop.xlane.xlu0 %587
  %589 = vadd.xlane.f32.xlu0 %v576
  %v590 = vpop.xlane.xlu0 %589
  %591 = vadd.xlane.f32.xlu0 %v577
  %v592 = vpop.xlane.xlu0 %591
  %593 = vadd.xlane.f32.xlu0 %v578
  %v594 = vpop.xlane.xlu0 %593
  %v595 = vadd.f32 %v580, %v501
  %v596 = vadd.f32 %v582, %v501
  %v597 = vadd.f32 %v584, %v501
  %v598 = vadd.f32 %v586, %v501
  %v599 = vadd.f32 %v588, %v501
  %v600 = vadd.f32 %v590, %v501
  %v601 = vadd.f32 %v592, %v501
  %v602 = vadd.f32 %v594, %v501
  %vm603 = vcmask 23568
  %604 = vst.msk [vmem:[%s7] sm:$0xff] %vm603, %v595
  %605 = vst.msk [vmem:[%s7 + $0x8] sm:$0xff] %vm603, %v596
  %606 = vst.msk [vmem:[%s7 + $0x10] sm:$0xff] %vm603, %v597
  %607 = vst.msk [vmem:[%s7 + $0x18] sm:$0xff] %vm603, %v598
  %608 = vst.msk [vmem:[%s7 + $0x20] sm:$0xff] %vm603, %v599
  %609 = vst.msk [vmem:[%s7 + $0x28] sm:$0xff] %vm603, %v600
  %610 = vst.msk [vmem:[%s7 + $0x30] sm:$0xff] %vm603, %v601
  %611 = vst.msk [vmem:[%s7 + $0x38] sm:$0xff] %vm603, %v602
  // Predicated region
  $region30: #{tpu_custom_call.1} parent=0 // pred_check
    _
  $region31: #{tpu_custom_call.1} parent=0 // pred_check_branch
    %613 = sbr.rel (0) target = $region33
  $region32: #{tpu_custom_call.1} parent=0 // pred_region
    _
  $region33: #{tpu_custom_call.1} parent=0 // pred_fallthru
    _
  // Predicated region
  $region34: #{tpu_custom_call.1} parent=0 // pred_check
    _
  $region35: #{tpu_custom_call.1} parent=0 // pred_check_branch
    %615 = sbr.rel (0) target = $region37
  $region36: #{tpu_custom_call.1} parent=0 // pred_region
    _
  $region37: #{tpu_custom_call.1} parent=0 // pred_fallthru
    _

</llo_original>
